<compile_context>
chip_gen: v7x
topology: tpu7x:2x2x1
jax: 0.10.0
libtpu: 0.0.40
codegen_flags: <defaults>
</compile_context>

<pallas_src>
import functools

import jax
import jax.numpy as jnp
from jax.experimental import pallas as pl
from jax.experimental.pallas import tpu as pltpu


# ----------------------------- kernels --------------------------------------


def outconv_kernel(x_ref, w_ref, b_ref, o_ref):
    # x_ref: (Cin, THW)   w_ref: (Cout, Cin)   b_ref: (Cout, 1)   o_ref: (Cout, THW)
    acc = jnp.dot(w_ref[...], x_ref[...], preferred_element_type=jnp.float32)
    o_ref[...] = (acc + b_ref[...].astype(jnp.float32)).astype(o_ref.dtype)


def outconv_small_kernel(x_ref, w_ref, b_ref, o_ref):
    # Whole problem in one grid step (tiny shapes only).
    # x_ref: (N, Cin, HW)  w_ref: (Cout, Cin)  b_ref: (Cout, 1)  o_ref: (N, Cout, HW)
    w = w_ref[...]
    b = b_ref[...].astype(jnp.float32)
    for n in range(x_ref.shape[0]):  # static, tiny N
        acc = jnp.dot(w, x_ref[n], preferred_element_type=jnp.float32)
        o_ref[n] = (acc + b).astype(o_ref.dtype)


# ------------------------------ helpers --------------------------------------


def _vmem_capacity_bytes():
    try:
        return int(pltpu.get_tpu_info().vmem_capacity_bytes)
    except Exception:
        return 64 << 20  # conservative (v7x-sized) fallback


def _pick_thw(N, Cin, Cout, HW, itemsize, thw_max, vmem_cap):
    """Pixel-tile size: as big as VMEM allows (generation-aware), lane-rounded."""
    per_pixel = (Cin + Cout) * itemsize
    # Double-buffered in+out tiles must fit in ~60% of VMEM.
    thw_vmem = max(128, int(0.6 * vmem_cap) // (2 * per_pixel))
    thw = min(thw_max, thw_vmem)
    # If the batch axis can't be sharded, make sure the pixel axis yields
    # >= 2 blocks so both v7x TensorCores get work (free on v5e/v6e).
    if N == 1 and HW > 2 * 128:
        thw = min(thw, pl.cdiv(HW, 2))
    thw = min(thw, HW)
    thw = max(128, pl.cdiv(thw, 128) * 128)        # round up to lane multiple
    thw = min(thw, pl.cdiv(HW, 128) * 128)         # never exceed lane-rounded image
    return thw


# ------------------------------ wrapper --------------------------------------


@functools.partial(jax.jit, static_argnames=("thw", "force_tiled"))
def outconv(x, weight, bias, *, thw=32768, force_tiled=False):
    """1x1 Conv2d: x NCHW, weight (Cout, Cin, 1, 1), bias (Cout,) -> NCHW."""
    N, Cin, H, W = x.shape
    Cout = weight.shape[0]
    HW = H * W
    itemsize = jnp.dtype(x.dtype).itemsize

    x3 = x.reshape(N, Cin, HW)              # free reshape (contiguous)
    w2 = weight.reshape(Cout, Cin)          # weight stays resident in VMEM
    b2 = bias.reshape(Cout, 1)              # broadcasts over the pixel (lane) axis

    cost = pl.CostEstimate(
        flops=2 * N * HW * Cin * Cout,
        transcendentals=0,
        bytes_accessed=itemsize * (N * HW * (Cin + Cout) + Cout * Cin + Cout),
    )

    # Tiny problems: one grid step over the whole batch (nothing to amortize
    # the per-step overhead against, and everything fits in VMEM anyway).
    small = (N * HW * (Cin + Cout) * itemsize) <= (1 << 20)
    if small and not force_tiled:
        out3 = pl.pallas_call(
            outconv_small_kernel,
            out_shape=jax.ShapeDtypeStruct((N, Cout, HW), x.dtype),
            cost_estimate=cost,
        )(x3, w2, b2)
        return out3.reshape(N, Cout, H, W)

    # Tiled streaming path.
    vmem_cap = _vmem_capacity_bytes()
    thw = _pick_thw(N, Cin, Cout, HW, itemsize, thw, vmem_cap)
    num_pixel_tiles = pl.cdiv(HW, thw)      # last tile may be partial (masked)

    in_tile = Cin * thw * itemsize
    out_tile = Cout * thw * itemsize
    need = 2 * (in_tile + out_tile) + (Cout * Cin + Cout) * itemsize + (2 << 20)
    ceiling = (48 << 20) if vmem_cap <= (64 << 20) else (96 << 20)
    vmem_limit = int(min(max(need, 16 << 20), ceiling))

    out3 = pl.pallas_call(
        outconv_kernel,
        out_shape=jax.ShapeDtypeStruct((N, Cout, HW), x.dtype),
        grid_spec=pltpu.PrefetchScalarGridSpec(
            num_scalar_prefetch=0,
            grid=(N, num_pixel_tiles),
            in_specs=[
                pl.BlockSpec((None, Cin, thw), lambda n, j: (n, 0, j)),  # pixel tile
                pl.BlockSpec((Cout, Cin), lambda n, j: (0, 0)),          # full weight
                pl.BlockSpec((Cout, 1), lambda n, j: (0, 0)),            # bias
            ],
            out_specs=pl.BlockSpec((None, Cout, thw), lambda n, j: (n, 0, j)),
        ),
        compiler_params=pltpu.CompilerParams(
            dimension_semantics=("parallel", "parallel"),
            vmem_limit_bytes=vmem_limit,
        ),
        cost_estimate=cost,
    )(x3, w2, b2)

    return out3.reshape(N, Cout, H, W)


# ------------------------------- test ----------------------------------------


def _ref_outconv(x, weight, bias):
    Cout, Cin = weight.shape[0], weight.shape[1]
    return (
        jnp.einsum("nchw,oc->nohw", x, weight.reshape(Cout, Cin))
        + bias[None, :, None, None]
    )


if __name__ == "__main__":
    key = jax.random.PRNGKey(0)
    k_x, k_w, k_b, k_x2 = jax.random.split(key, 4)

    N, Cin, Cout, Hs, Ws = 2, 4, 3, 16, 16

    # Deterministic parameter init (shapes from nn.Conv2d(in, out, kernel_size=1)).
    bound = 1.0 / (Cin ** 0.5)
    weight = jax.random.uniform(k_w, (Cout, Cin, 1, 1), jnp.float32, -bound, bound)
    bias = jax.random.uniform(k_b, (Cout,), jnp.float32, -bound, bound)

    # --- Test 1: module-sized input (takes the single-step small path) -------
    x = jax.random.normal(k_x, (N, Cin, Hs, Ws), dtype=jnp.float32)
    out = jax.block_until_ready(outconv(x, weight, bias))
    ref = _ref_outconv(x, weight, bias)
    assert out.shape == (N, Cout, Hs, Ws)
    assert jnp.allclose(out, ref, atol=1e-5, rtol=1e-5)

    # --- Test 2: ragged H*W, forced tiled path (masked trailing pixel block) -
    Hr, Wr = 15, 20                          # H*W = 300, not a multiple of 128
    xr = jax.random.normal(k_x2, (1, Cin, Hr, Wr), dtype=jnp.float32)
    out_r = jax.block_until_ready(outconv(xr, weight, bias, thw=128, force_tiled=True))
    ref_r = _ref_outconv(xr, weight, bias)
    assert out_r.shape == (1, Cout, Hr, Wr)
    assert jnp.allclose(out_r, ref_r, atol=1e-5, rtol=1e-5)

    # --- Test 3: divisible shape on the tiled path (batch-sharded grid) ------
    out_t = jax.block_until_ready(outconv(x, weight, bias, force_tiled=True))
    assert jnp.allclose(out_t, ref, atol=1e-5, rtol=1e-5)

    print("KERNEL_OK")
</pallas_src>

<mosaic_0001>
module attributes {stable_mosaic.version = 11 : i64} {
  func.func @outconv_small_kernel(%arg0: memref<2x4x256xf32, #tpu.memory_space<vmem>>, %arg1: memref<3x4xf32, #tpu.memory_space<vmem>>, %arg2: memref<3x1xf32, #tpu.memory_space<vmem>>, %arg3: memref<2x3x256xf32, #tpu.memory_space<vmem>>) attributes {dimension_semantics = [], scalar_prefetch = 0 : i64, scratch_operands = 0 : i64, tpu.core_type = #tpu.core_type<tc>} {
    %c0 = arith.constant 0 : index
    %c0_0 = arith.constant 0 : index
    %0 = vector.load %arg1[%c0, %c0_0] : memref<3x4xf32, #tpu.memory_space<vmem>>, vector<3x4xf32>
    %c0_1 = arith.constant 0 : index
    %c0_2 = arith.constant 0 : index
    %1 = vector.load %arg2[%c0_1, %c0_2] : memref<3x1xf32, #tpu.memory_space<vmem>>, vector<3x1xf32>
    %c0_3 = arith.constant 0 : index
    %c0_4 = arith.constant 0 : index
    %c0_5 = arith.constant 0 : index
    %2 = vector.load %arg0[%c0_3, %c0_4, %c0_5] : memref<2x4x256xf32, #tpu.memory_space<vmem>>, vector<1x4x256xf32>
    %3 = vector.shape_cast %2 : vector<1x4x256xf32> to vector<4x256xf32>
    %cst = arith.constant dense<0.000000e+00> : vector<3x256xf32>
    %4 = tpu.matmul %0, %3, %cst {dimension_numbers = #tpu.dot_dimension_numbers<[1], [0], [0], [1], [0, 0, 1, 1], [], []>} : vector<3x4xf32>, vector<4x256xf32>, vector<3x256xf32> -> vector<3x256xf32>
    %5 = vector.broadcast %1 : vector<3x1xf32> to vector<3x256xf32>
    %6 = arith.addf %4, %5 : vector<3x256xf32>
    %c0_6 = arith.constant 0 : index
    %c0_7 = arith.constant 0 : index
    %c0_8 = arith.constant 0 : index
    %7 = vector.load %arg3[%c0_6, %c0_7, %c0_8] : memref<2x3x256xf32, #tpu.memory_space<vmem>>, vector<1x3x256xf32>
    %8 = vector.shape_cast %7 : vector<1x3x256xf32> to vector<3x256xf32>
    %9 = vector.shape_cast %6 : vector<3x256xf32> to vector<1x3x256xf32>
    tpu.vector_store %arg3[%c0_6, %c0_7, %c0_8], %9 {strides = array<i32>} : memref<2x3x256xf32, #tpu.memory_space<vmem>>, vector<1x3x256xf32>,
    %c1 = arith.constant 1 : index
    %c0_9 = arith.constant 0 : index
    %c0_10 = arith.constant 0 : index
    %10 = vector.load %arg0[%c1, %c0_9, %c0_10] : memref<2x4x256xf32, #tpu.memory_space<vmem>>, vector<1x4x256xf32>
    %11 = vector.shape_cast %10 : vector<1x4x256xf32> to vector<4x256xf32>
    %cst_11 = arith.constant dense<0.000000e+00> : vector<3x256xf32>
    %12 = tpu.matmul %0, %11, %cst_11 {dimension_numbers = #tpu.dot_dimension_numbers<[1], [0], [0], [1], [0, 0, 1, 1], [], []>} : vector<3x4xf32>, vector<4x256xf32>, vector<3x256xf32> -> vector<3x256xf32>
    %13 = vector.broadcast %1 : vector<3x1xf32> to vector<3x256xf32>
    %14 = arith.addf %12, %13 : vector<3x256xf32>
    %c1_12 = arith.constant 1 : index
    %c0_13 = arith.constant 0 : index
    %c0_14 = arith.constant 0 : index
    %15 = vector.load %arg3[%c1_12, %c0_13, %c0_14] : memref<2x3x256xf32, #tpu.memory_space<vmem>>, vector<1x3x256xf32>
    %16 = vector.shape_cast %15 : vector<1x3x256xf32> to vector<3x256xf32>
    %17 = vector.shape_cast %14 : vector<3x256xf32> to vector<1x3x256xf32>
    tpu.vector_store %arg3[%c1_12, %c0_13, %c0_14], %17 {strides = array<i32>} : memref<2x3x256xf32, #tpu.memory_space<vmem>>, vector<1x3x256xf32>,
    return
  }
}

</mosaic_0001>

<llo_original>
// kernel: outconv.1
$region0: #{outconv.1}
  #allocation0 [shape = 'u32[]', space=smem, size = 0x4, offset = 0x4, fixed_abs, tag = 'smem constant byte address 0x4 - core index']
  #allocation1 [shape = 'u32[144,128]{1,0:T(1,128)}', space=vmem, size = 0x12000, scoped, tag = 'internal scratch']
  %s0 = inlined_call_operand.vmem [shape: f32[2,4,256], index: 0, kind: input, shape index: {}]
  %s1 = inlined_call_operand.vmem [shape: f32[3,4], index: 1, kind: input, shape index: {}]
  %s2 = inlined_call_operand.vmem [shape: f32[3,1], index: 2, kind: input, shape index: {}]
  %s3 = inlined_call_operand.vmem [shape: f32[2,3,256], index: 3, kind: output, shape index: {}]
  %s4 = sld [smem:[#allocation0]]
  $region22: #{outconv.1} parent=0
    _
  %s6 = ssub.s32 1, %s4
  %s7 = scalar_select 0, %s6, %s4
  // Predicated region
  $region2: #{outconv.1} parent=0 // pred_check
    _
  $region3: #{outconv.1} parent=0 // pred_check_branch
    %9 = sbr.rel (0) target = $region5
  $region4: #{outconv.1} parent=0 // pred_region
    _
  $region5: #{outconv.1} parent=0 // pred_fallthru
    _
  // Predicated region
  $region6: #{outconv.1} parent=0 // pred_check
    _
  $region7: #{outconv.1} parent=0 // pred_check_branch
    %11 = sbr.rel (0) target = $region9
  $region8: #{outconv.1} parent=0 // pred_region
    _
  $region9: #{outconv.1} parent=0 // pred_fallthru
    _
  // Predicated region
  $region10: #{outconv.1} parent=0 // pred_check
    _
  $region11: #{outconv.1} parent=0 // pred_check_branch
    %13 = sbr.rel (0) target = $region13
  $region12: #{outconv.1} parent=0 // pred_region
    _
  $region13: #{outconv.1} parent=0 // pred_fallthru
    _
  %v14 = vld [vmem:[%s1] sm:$0x7]
  %v15 = vld [vmem:[%s2] sm:$0x7]
  %v16 = vld [vmem:[%s0] sm:$0xff]
  %18 = vset.pattern.permute.xlu0 0
  %19 = vperm.xlu0 %18, %v15
  %v20 = vpop.permute.xlu0 %19
  %v23 = vcombine.high %v16, %v16
  %vm24 = vcmask 31744
  %v26 = vsel %vm24, %v14, 0
  %vm28 = vcmask 1043456
  %v29 = vsel %vm28, %v16, 0
  %v31 = vsel %vm28, %v23, 0
  %33 = vmatprep.subr.mxu0 %v31
  %34 = vmatpush1.msra.mxu0 %v29
  %35 = vmatprep.subr.mxu0 0.0
  %36 = vmatpush1.msra.mxu0 0.0
  %37 = vmatprep.subr.mxu0 0.0
  %38 = vmatpush1.msra.mxu0 0.0
  %39 = vmatprep.subr.mxu0 0.0
  %40 = vmatpush1.msra.mxu0 0.0
  %41 = vmatprep.subr.mxu0 0.0
  %42 = vmatpush1.msra.mxu0 0.0
  %43 = vmatprep.subr.mxu0 0.0
  %44 = vmatpush1.msra.mxu0 0.0
  %45 = vmatprep.subr.mxu0 0.0
  %46 = vmatpush1.msra.mxu0 0.0
  %47 = vmatprep.subr.mxu0 0.0
  %48 = vmatpush1.msra.mxu0 0.0
  %49 = vmatprep.subr.mxu0 0.0
  %50 = vmatpush1.msra.mxu0 0.0
  %51 = vmatprep.subr.mxu0 0.0
  %52 = vmatpush1.msra.mxu0 0.0
  %53 = vmatprep.subr.mxu0 0.0
  %54 = vmatpush1.msra.mxu0 0.0
  %55 = vmatprep.subr.mxu0 0.0
  %56 = vmatpush1.msra.mxu0 0.0
  %57 = vmatprep.subr.mxu0 0.0
  %58 = vmatpush1.msra.mxu0 0.0
  %59 = vmatprep.subr.mxu0 0.0
  %60 = vmatpush1.msra.mxu0 0.0
  %61 = vmatprep.subr.mxu0 0.0
  %62 = vmatpush1.msra.mxu0 0.0
  %63 = vmatprep.subr.mxu0 0.0
  %64 = vmatpush1.msra.mxu0 0.0
  %65 = vmatprep.subr.mxu0 0.0
  %66 = vmatpush1.msra.mxu0 0.0
  %67 = vmatprep.subr.mxu0 0.0
  %68 = vmatpush1.msra.mxu0 0.0
  %69 = vmatprep.subr.mxu0 0.0
  %70 = vmatpush1.msra.mxu0 0.0
  %71 = vmatprep.subr.mxu0 0.0
  %72 = vmatpush1.msra.mxu0 0.0
  %73 = vmatprep.subr.mxu0 0.0
  %74 = vmatpush1.msra.mxu0 0.0
  %75 = vmatprep.subr.mxu0 0.0
  %76 = vmatpush1.msra.mxu0 0.0
  %77 = vmatprep.subr.mxu0 0.0
  %78 = vmatpush1.msra.mxu0 0.0
  %79 = vmatprep.subr.mxu0 0.0
  %80 = vmatpush1.msra.mxu0 0.0
  %81 = vmatprep.subr.mxu0 0.0
  %82 = vmatpush1.msra.mxu0 0.0
  %83 = vmatprep.subr.mxu0 0.0
  %84 = vmatpush1.msra.mxu0 0.0
  %85 = vmatprep.subr.mxu0 0.0
  %86 = vmatpush1.msra.mxu0 0.0
  %87 = vmatprep.subr.mxu0 0.0
  %88 = vmatpush1.msra.mxu0 0.0
  %89 = vmatprep.subr.mxu0 0.0
  %90 = vmatpush1.msra.mxu0 0.0
  %91 = vmatprep.subr.mxu0 0.0
  %92 = vmatpush1.msra.mxu0 0.0
  %93 = vmatprep.subr.mxu0 0.0
  %94 = vmatpush1.msra.mxu0 0.0
  %95 = vmatprep.subr.mxu0 0.0
  %96 = vmatpush1.msra.mxu0 0.0
  %97 = vmatprep.mubr.f32.mxu0 0.0
  %98 = vmatmul.mubr.f32.gmra.mrb[0].mxu0 %v26
  %v99 = vpop.f32.mrb[0].mxu0
  %v100 = vadd.f32 %v20, %v99
  %v101 = vpop.f32.mrb[0].mxu0
  %v102 = vadd.f32 %v20, %v101
  %103 = vdwg.mxu0
  %v106 = vcombine.low %v100, %v102
  %108 = vst [vmem:[%s3] sm:$0x77] %v106
  %s109 = scalar_lea.vmem %s0, 8
  %v110 = vld [vmem:[%s109] sm:$0xff]
  %v112 = vcombine.high %v110, %v110
  %v113 = vsel %vm28, %v110, 0
  %v115 = vsel %vm28, %v112, 0
  %117 = vmatprep.subr.mxu0 %v115
  %118 = vmatpush1.msra.mxu0 %v113
  %119 = vmatprep.subr.mxu0 0.0
  %120 = vmatpush1.msra.mxu0 0.0
  %121 = vmatprep.subr.mxu0 0.0
  %122 = vmatpush1.msra.mxu0 0.0
  %123 = vmatprep.subr.mxu0 0.0
  %124 = vmatpush1.msra.mxu0 0.0
  %125 = vmatprep.subr.mxu0 0.0
  %126 = vmatpush1.msra.mxu0 0.0
  %127 = vmatprep.subr.mxu0 0.0
  %128 = vmatpush1.msra.mxu0 0.0
  %129 = vmatprep.subr.mxu0 0.0
  %130 = vmatpush1.msra.mxu0 0.0
  %131 = vmatprep.subr.mxu0 0.0
  %132 = vmatpush1.msra.mxu0 0.0
  %133 = vmatprep.subr.mxu0 0.0
  %134 = vmatpush1.msra.mxu0 0.0
  %135 = vmatprep.subr.mxu0 0.0
  %136 = vmatpush1.msra.mxu0 0.0
  %137 = vmatprep.subr.mxu0 0.0
  %138 = vmatpush1.msra.mxu0 0.0
  %139 = vmatprep.subr.mxu0 0.0
  %140 = vmatpush1.msra.mxu0 0.0
  %141 = vmatprep.subr.mxu0 0.0
  %142 = vmatpush1.msra.mxu0 0.0
  %143 = vmatprep.subr.mxu0 0.0
  %144 = vmatpush1.msra.mxu0 0.0
  %145 = vmatprep.subr.mxu0 0.0
  %146 = vmatpush1.msra.mxu0 0.0
  %147 = vmatprep.subr.mxu0 0.0
  %148 = vmatpush1.msra.mxu0 0.0
  %149 = vmatprep.subr.mxu0 0.0
  %150 = vmatpush1.msra.mxu0 0.0
  %151 = vmatprep.subr.mxu0 0.0
  %152 = vmatpush1.msra.mxu0 0.0
  %153 = vmatprep.subr.mxu0 0.0
  %154 = vmatpush1.msra.mxu0 0.0
  %155 = vmatprep.subr.mxu0 0.0
  %156 = vmatpush1.msra.mxu0 0.0
  %157 = vmatprep.subr.mxu0 0.0
  %158 = vmatpush1.msra.mxu0 0.0
  %159 = vmatprep.subr.mxu0 0.0
  %160 = vmatpush1.msra.mxu0 0.0
  %161 = vmatprep.subr.mxu0 0.0
  %162 = vmatpush1.msra.mxu0 0.0
  %163 = vmatprep.subr.mxu0 0.0
  %164 = vmatpush1.msra.mxu0 0.0
  %165 = vmatprep.subr.mxu0 0.0
  %166 = vmatpush1.msra.mxu0 0.0
  %167 = vmatprep.subr.mxu0 0.0
  %168 = vmatpush1.msra.mxu0 0.0
  %169 = vmatprep.subr.mxu0 0.0
  %170 = vmatpush1.msra.mxu0 0.0
  %171 = vmatprep.subr.mxu0 0.0
  %172 = vmatpush1.msra.mxu0 0.0
  %173 = vmatprep.subr.mxu0 0.0
  %174 = vmatpush1.msra.mxu0 0.0
  %175 = vmatprep.subr.mxu0 0.0
  %176 = vmatpush1.msra.mxu0 0.0
  %177 = vmatprep.subr.mxu0 0.0
  %178 = vmatpush1.msra.mxu0 0.0
  %179 = vmatprep.subr.mxu0 0.0
  %180 = vmatpush1.msra.mxu0 0.0
  %181 = vmatprep.mubr.f32.mxu0 0.0
  %182 = vmatmul.mubr.f32.gmra.mrb[0].mxu0 %v26
  %v183 = vpop.f32.mrb[0].mxu0
  %v184 = vadd.f32 %v20, %v183
  %v185 = vpop.f32.mrb[0].mxu0
  %v186 = vadd.f32 %v20, %v185
  %187 = vdwg.mxu0
  %v190 = vcombine.low %v184, %v186
  %s192 = scalar_lea.vmem %s3, 8
  %193 = vst [vmem:[%s192] sm:$0x77] %v190
  // Predicated region
  $region14: #{outconv.1} parent=0 // pred_check
    _
  $region15: #{outconv.1} parent=0 // pred_check_branch
    %195 = sbr.rel (0) target = $region17
  $region16: #{outconv.1} parent=0 // pred_region
    _
  $region17: #{outconv.1} parent=0 // pred_fallthru
    _
  // Predicated region
  $region18: #{outconv.1} parent=0 // pred_check
    _
  $region19: #{outconv.1} parent=0 // pred_check_branch
    %197 = sbr.rel (0) target = $region21
  $region20: #{outconv.1} parent=0 // pred_region
    _
  $region21: #{outconv.1} parent=0 // pred_fallthru
    _

</llo_original>
